<compile_context>
chip_gen: v6e
topology: v6e:2x2x1
jax: 0.10.0
libtpu: 0.0.40
codegen_flags: <defaults>
</compile_context>

<pallas_src>
import functools

import jax
import jax.numpy as jnp
from jax.experimental import pallas as pl
from jax.experimental.pallas import tpu as pltpu


def _round_up(x, m):
    return ((x + m - 1) // m) * m


def _cdiv(a, b):
    return -(-a // b)


def _hist_kernel(x_ref, o_ref, acc_ref, *, bins, hw, tp, chunk,
                 tiles_per_split, needs_mask, compute_dtype):
    # x_ref:   (TR, TP)         input block (native dtype)
    # o_ref:   (1, bins, TR)    per-split raw-count block (written on last j)
    # acc_ref: (bins, TR, 128)  per-bin / per-row / per-lane partial counts
    j = pl.program_id(2)

    @pl.when(j == 0)
    def _init():
        acc_ref[...] = jnp.zeros_like(acc_ref)

    tr = acc_ref.shape[1]
    n_chunks = tp // chunk
    n_groups = chunk // 128

    if needs_mask:
        # Global pixel offset of this tile; columns >= HW hold unspecified data
        # (ragged last tile), so they are folded out of `ok` below.
        base = (pl.program_id(0) * tiles_per_split + j) * tp
        lane = jax.lax.broadcasted_iota(jnp.int32, (tr, chunk), 1)  # hoisted

    scale = jnp.float32(bins * 0.25)
    shift = jnp.float32(bins * 0.75)
    top = jnp.float32(bins - 1)

    for g in range(n_chunks):
        xg = x_ref[:, pl.ds(g * chunk, chunk)].astype(jnp.float32)
        # Module semantics: img = (x+1)/2, then torch.histc over [-1, 1]:
        #   bin = floor(((x+1)/2 + 1)/2 * bins) = floor(x*bins/4 + 3*bins/4)
        #   values outside the range are ignored, v == max -> last bin.
        idx = jnp.minimum(jnp.floor(xg * scale + shift), top)
        ok = jnp.logical_and(xg >= -3.0, xg <= 1.0)
        if needs_mask:
            ok = jnp.logical_and(ok, lane < (hw - base - g * chunk))
        idx = jnp.where(ok, idx, jnp.float32(-1.0)).astype(compute_dtype)

        for b in range(bins):
            hit = (idx == b).astype(compute_dtype)                # (TR, CHUNK)
            part = hit[:, 0:128]
            for gg in range(1, n_groups):                          # VPU lane-group folds
                part = part + hit[:, gg * 128:(gg + 1) * 128]
            acc_ref[b, :, :] += part.astype(jnp.float32)           # (TR, 128)

    @pl.when(j == pl.num_programs(2) - 1)
    def _finalize():
        # One cross-lane reduce per output block; raw counts only.  Exact
        # normalization happens in the wrapper.
        o_ref[0, :, :] = jnp.sum(acc_ref[...], axis=-1)


def _device_kind():
    try:
        return jax.devices()[0].device_kind.lower()
    except Exception:
        return ""


def color_histogram(img_reference, bins=16, *, max_pixels_per_tile=16384,
                    compute_dtype=None, force_splits=None):
    """img_reference: (B, C, H, W) -> (B, C, bins), matching the torch module."""
    B, C, H, W = img_reference.shape
    R, HW = B * C, H * W

    kind = _device_kind()
    if compute_dtype is None:
        # bf16-native VPUs (v6e / v7x) run the compare/count stage ~2x faster;
        # keep f32 on older parts (v5e has no bf16 VPU path).
        compute_dtype = jnp.bfloat16 if ("v6" in kind or "v7" in kind) else jnp.float32

    # Row tiling: one full-extent tile if B*C <= 128, else lane-dense 128-row tiles.
    r8 = _round_up(R, 8)
    TR = r8 if r8 <= 128 else 128
    n_row_tiles = _cdiv(R, TR)
    R_out = n_row_tiles * TR

    # Chunk width: keep per-chunk (TR, CHUNK) temporaries vreg-sized (~16 KiB).
    CHUNK = max(128, min(512, (4096 // TR) // 128 * 128))

    # Pixel tiling: large blocks (~512 KiB) to amortize grid-step overhead;
    # temporaries no longer depend on TP thanks to chunking.
    tp_cap = max(CHUNK, (131072 // TR) // CHUNK * CHUNK)
    tp_cap = min(tp_cap, _round_up(max_pixels_per_tile, CHUNK))
    TP = min(tp_cap, _round_up(HW, CHUNK))
    n_pix_tiles = _cdiv(HW, TP)
    needs_mask = (n_pix_tiles * TP != HW)

    # Optional 2-way split of the pixel reduction so both v7x TensorCores get
    # work when there is only a single row tile (typical B*C = 3..8).
    if force_splits is not None:
        n_splits = force_splits
    else:
        n_splits = 2 if ("v7" in kind and n_row_tiles == 1) else 1
    if n_splits > 1 and (n_pix_tiles < n_splits or n_pix_tiles % n_splits != 0):
        n_splits = 1
    tiles_per_split = n_pix_tiles // n_splits

    x = img_reference.reshape(R, HW)     # free reshape; no pad / astype HBM copy

    kernel = functools.partial(
        _hist_kernel, bins=bins, hw=HW, tp=TP, chunk=CHUNK,
        tiles_per_split=tiles_per_split, needs_mask=needs_mask,
        compute_dtype=compute_dtype)

    out = pl.pallas_call(
        kernel,
        out_shape=jax.ShapeDtypeStruct((n_splits, bins, R_out), jnp.float32),
        grid_spec=pltpu.PrefetchScalarGridSpec(
            num_scalar_prefetch=0,
            grid=(n_splits, n_row_tiles, tiles_per_split),
            in_specs=[pl.BlockSpec(
                (TR, TP), lambda s, i, j: (i, s * tiles_per_split + j))],
            out_specs=pl.BlockSpec(
                (1, bins, TR), lambda s, i, j: (s, 0, i)),
            scratch_shapes=[pltpu.VMEM((bins, TR, 128), jnp.float32)],
        ),
        compiler_params=pltpu.CompilerParams(
            dimension_semantics=("parallel", "parallel", "arbitrary"),
            vmem_limit_bytes=32 * 1024 * 1024,
        ),
    )(x)

    hist = jnp.sum(out, axis=0)[:, :R]                         # (bins, R) raw counts
    hist = jnp.transpose(hist, (1, 0)).reshape(B, C, bins)
    # Exact normalization (tiny (B, C, bins) op), matching the module's epsilon.
    return hist / (jnp.sum(hist, axis=-1, keepdims=True) + 1e-6)


def _reference(img_reference, bins=16):
    """Pure-JAX reference reproducing the PyTorch module's semantics."""
    img = (img_reference + 1.0) / 2.0
    B, C, H, W = img.shape
    v = img.reshape(B, C, H * W)
    minv, maxv = -1.0, 1.0
    scaled = (v - minv) / (maxv - minv) * bins
    idx = jnp.minimum(jnp.floor(scaled), bins - 1)
    valid = (v >= minv) & (v <= maxv)
    one_hot = (idx[..., None] == jnp.arange(bins, dtype=jnp.float32)) & valid[..., None]
    hist = jnp.sum(one_hot.astype(jnp.float32), axis=2)        # (B, C, bins)
    return hist / (jnp.sum(hist, axis=-1, keepdims=True) + 1e-6)


def _make_image(key, shape):
    # Values (2u+1)/128 - 1: uniformly spread in (-1, 1) and always >= 1/128
    # away from every histogram bin edge, so kernel and reference can never
    # disagree on a bin via float rounding -> tight tolerances below.
    u = jax.random.randint(key, shape, 0, 128)
    return (2 * u + 1).astype(jnp.float32) / 128.0 - 1.0


if __name__ == "__main__":
    k1, k2, k3, k4 = jax.random.split(jax.random.PRNGKey(0), 4)

    # Case 1: typical small batch (B*C = 8), single pixel tile, default dtype.
    img1 = _make_image(k1, (2, 4, 16, 16))
    out1 = jax.block_until_ready(color_histogram(img1))
    ref1 = _reference(img1)
    assert out1.shape == (2, 4, 16)
    assert jnp.allclose(out1, ref1, atol=1e-5), "case 1 mismatch vs reference"
    assert jnp.allclose(jnp.sum(out1, axis=-1), 1.0, atol=1e-4)

    # Case 2: ragged rows (R=3) and ragged pixel tail (HW=100) -> in-kernel
    # masking; also forces the bf16 compare/count path on any chip.
    img2 = _make_image(k2, (1, 3, 10, 10))
    out2 = jax.block_until_ready(color_histogram(img2, compute_dtype=jnp.bfloat16))
    ref2 = _reference(img2)
    assert out2.shape == (1, 3, 16)
    assert jnp.allclose(out2, ref2, atol=1e-5), "case 2 mismatch vs reference"

    # Case 3: many pixel tiles + forced 2-way split of the reduction
    # (exercises the v7x dual-TensorCore path and multi-step accumulation
    # with a ragged final tile; correct on any TPU).
    img3 = _make_image(k3, (1, 4, 60, 60))
    out3 = jax.block_until_ready(
        color_histogram(img3, max_pixels_per_tile=512, force_splits=2))
    ref3 = _reference(img3)
    assert out3.shape == (1, 4, 16)
    assert jnp.allclose(out3, ref3, atol=1e-5), "case 3 mismatch vs reference"

    # Case 4: many rows (B*C = 256) -> lane-dense 128-row tiles, forced f32 path.
    img4 = _make_image(k4, (16, 16, 4, 4))
    out4 = jax.block_until_ready(color_histogram(img4, compute_dtype=jnp.float32))
    ref4 = _reference(img4)
    assert out4.shape == (16, 16, 16)
    assert jnp.allclose(out4, ref4, atol=1e-5), "case 4 mismatch vs reference"

    print("KERNEL_OK")
</pallas_src>

<mosaic_0001>
module attributes {stable_mosaic.version = 11 : i64} {
  func.func @_hist_kernel(%arg0: i32, %arg1: i32, %arg2: i32, %arg3: memref<8x512xf32, #tpu.memory_space<vmem>>, %arg4: memref<1x16x8xf32, #tpu.memory_space<vmem>>, %arg5: memref<16x8x128xf32, #tpu.memory_space<vmem>>) attributes {dimension_semantics = [#tpu.dimension_semantics<parallel>, #tpu.dimension_semantics<parallel>, #tpu.dimension_semantics<arbitrary>], iteration_bounds = array<i64: 1, 1, 1>, scalar_prefetch = 0 : i64, scratch_operands = 1 : i64, tpu.core_type = #tpu.core_type<tc>, window_params = [{transform_indices = @transform_0, window_bounds = array<i64: 8, 512>}, {transform_indices = @transform_1, window_bounds = array<i64: 1, 16, 8>}]} {
    %c0_i32 = arith.constant 0 : i32
    %0 = arith.cmpi eq, %arg2, %c0_i32 : i32
    %1 = arith.extui %0 : i1 to i32
    %c0_i32_0 = arith.constant 0 : i32
    %2 = arith.cmpi ne, %1, %c0_i32_0 : i32
    scf.if %2 {
      %cst_107 = arith.constant 0.000000e+00 : f32
      %302 = vector.broadcast %cst_107 : f32 to vector<16x8x128xf32>
      %c0_108 = arith.constant 0 : index
      %c0_109 = arith.constant 0 : index
      %c0_110 = arith.constant 0 : index
      %303 = vector.load %arg5[%c0_108, %c0_109, %c0_110] : memref<16x8x128xf32, #tpu.memory_space<vmem>>, vector<16x8x128xf32>
      tpu.vector_store %arg5[%c0_108, %c0_109, %c0_110], %302 {strides = array<i32>} : memref<16x8x128xf32, #tpu.memory_space<vmem>>, vector<16x8x128xf32>,
    } else {
    }
    %c1_i32 = arith.constant 1 : i32
    %3 = arith.muli %arg0, %c1_i32 : i32
    %4 = arith.addi %3, %arg2 : i32
    %c512_i32 = arith.constant 512 : i32
    %5 = arith.muli %4, %c512_i32 : i32
    %6 = tpu.iota {dimensions = array<i32: 1>} : vector<8x512xi32>
    %c0 = arith.constant 0 : index
    %c0_1 = arith.constant 0 : index
    %7 = vector.load %arg3[%c0, %c0_1] : memref<8x512xf32, #tpu.memory_space<vmem>>, vector<8x512xf32>
    %cst = arith.constant 4.000000e+00 : f32
    %8 = vector.broadcast %cst : f32 to vector<8x512xf32>
    %9 = arith.mulf %7, %8 : vector<8x512xf32>
    %cst_2 = arith.constant 1.200000e+01 : f32
    %10 = vector.broadcast %cst_2 : f32 to vector<8x512xf32>
    %11 = arith.addf %9, %10 : vector<8x512xf32>
    %12 = math.floor %11 : vector<8x512xf32>
    %cst_3 = arith.constant 1.500000e+01 : f32
    %13 = vector.broadcast %cst_3 : f32 to vector<8x512xf32>
    %14 = arith.minimumf %12, %13 : vector<8x512xf32>
    %cst_4 = arith.constant -3.000000e+00 : f32
    %15 = vector.broadcast %cst_4 : f32 to vector<8x512xf32>
    %16 = arith.cmpf oge, %7, %15 : vector<8x512xf32>
    %cst_5 = arith.constant 1.000000e+00 : f32
    %17 = vector.broadcast %cst_5 : f32 to vector<8x512xf32>
    %18 = arith.cmpf ole, %7, %17 : vector<8x512xf32>
    %19 = arith.andi %16, %18 : vector<8x512xi1>
    %c256_i32 = arith.constant 256 : i32
    %20 = arith.subi %c256_i32, %5 : i32
    %c0_i32_6 = arith.constant 0 : i32
    %21 = arith.subi %20, %c0_i32_6 : i32
    %22 = vector.broadcast %21 : i32 to vector<8x512xi32>
    %23 = arith.cmpi slt, %6, %22 : vector<8x512xi32>
    %24 = arith.andi %19, %23 : vector<8x512xi1>
    %cst_7 = arith.constant -1.000000e+00 : f32
    %25 = vector.broadcast %cst_7 : f32 to vector<8x512xf32>
    %26 = arith.select %24, %14, %25 : vector<8x512xi1>, vector<8x512xf32>
    %cst_8 = arith.constant 0.000000e+00 : f32
    %27 = vector.broadcast %cst_8 : f32 to vector<8x512xf32>
    %28 = arith.cmpf oeq, %26, %27 : vector<8x512xf32>
    %29 = arith.extui %28 : vector<8x512xi1> to vector<8x512xi32>
    %30 = arith.sitofp %29 : vector<8x512xi32> to vector<8x512xf32>
    %31 = vector.extract_strided_slice %30 {offsets = [0, 0], sizes = [8, 128], strides = [1, 1]} : vector<8x512xf32> to vector<8x128xf32>
    %32 = vector.extract_strided_slice %30 {offsets = [0, 128], sizes = [8, 128], strides = [1, 1]} : vector<8x512xf32> to vector<8x128xf32>
    %33 = arith.addf %31, %32 : vector<8x128xf32>
    %34 = vector.extract_strided_slice %30 {offsets = [0, 256], sizes = [8, 128], strides = [1, 1]} : vector<8x512xf32> to vector<8x128xf32>
    %35 = arith.addf %33, %34 : vector<8x128xf32>
    %36 = vector.extract_strided_slice %30 {offsets = [0, 384], sizes = [8, 128], strides = [1, 1]} : vector<8x512xf32> to vector<8x128xf32>
    %37 = arith.addf %35, %36 : vector<8x128xf32>
    %c0_9 = arith.constant 0 : index
    %c0_10 = arith.constant 0 : index
    %c0_11 = arith.constant 0 : index
    %38 = vector.load %arg5[%c0_9, %c0_10, %c0_11] : memref<16x8x128xf32, #tpu.memory_space<vmem>>, vector<1x8x128xf32>
    %39 = vector.shape_cast %38 : vector<1x8x128xf32> to vector<8x128xf32>
    %40 = arith.addf %39, %37 : vector<8x128xf32>
    %c0_12 = arith.constant 0 : index
    %c0_13 = arith.constant 0 : index
    %c0_14 = arith.constant 0 : index
    %41 = vector.load %arg5[%c0_12, %c0_13, %c0_14] : memref<16x8x128xf32, #tpu.memory_space<vmem>>, vector<1x8x128xf32>
    %42 = vector.shape_cast %41 : vector<1x8x128xf32> to vector<8x128xf32>
    %43 = vector.shape_cast %40 : vector<8x128xf32> to vector<1x8x128xf32>
    tpu.vector_store %arg5[%c0_12, %c0_13, %c0_14], %43 {strides = array<i32>} : memref<16x8x128xf32, #tpu.memory_space<vmem>>, vector<1x8x128xf32>,
    %cst_15 = arith.constant 1.000000e+00 : f32
    %44 = vector.broadcast %cst_15 : f32 to vector<8x512xf32>
    %45 = arith.cmpf oeq, %26, %44 : vector<8x512xf32>
    %46 = arith.extui %45 : vector<8x512xi1> to vector<8x512xi32>
    %47 = arith.sitofp %46 : vector<8x512xi32> to vector<8x512xf32>
    %48 = vector.extract_strided_slice %47 {offsets = [0, 0], sizes = [8, 128], strides = [1, 1]} : vector<8x512xf32> to vector<8x128xf32>
    %49 = vector.extract_strided_slice %47 {offsets = [0, 128], sizes = [8, 128], strides = [1, 1]} : vector<8x512xf32> to vector<8x128xf32>
    %50 = arith.addf %48, %49 : vector<8x128xf32>
    %51 = vector.extract_strided_slice %47 {offsets = [0, 256], sizes = [8, 128], strides = [1, 1]} : vector<8x512xf32> to vector<8x128xf32>
    %52 = arith.addf %50, %51 : vector<8x128xf32>
    %53 = vector.extract_strided_slice %47 {offsets = [0, 384], sizes = [8, 128], strides = [1, 1]} : vector<8x512xf32> to vector<8x128xf32>
    %54 = arith.addf %52, %53 : vector<8x128xf32>
    %c1 = arith.constant 1 : index
    %c0_16 = arith.constant 0 : index
    %c0_17 = arith.constant 0 : index
    %55 = vector.load %arg5[%c1, %c0_16, %c0_17] : memref<16x8x128xf32, #tpu.memory_space<vmem>>, vector<1x8x128xf32>
    %56 = vector.shape_cast %55 : vector<1x8x128xf32> to vector<8x128xf32>
    %57 = arith.addf %56, %54 : vector<8x128xf32>
    %c1_18 = arith.constant 1 : index
    %c0_19 = arith.constant 0 : index
    %c0_20 = arith.constant 0 : index
    %58 = vector.load %arg5[%c1_18, %c0_19, %c0_20] : memref<16x8x128xf32, #tpu.memory_space<vmem>>, vector<1x8x128xf32>
    %59 = vector.shape_cast %58 : vector<1x8x128xf32> to vector<8x128xf32>
    %60 = vector.shape_cast %57 : vector<8x128xf32> to vector<1x8x128xf32>
    tpu.vector_store %arg5[%c1_18, %c0_19, %c0_20], %60 {strides = array<i32>} : memref<16x8x128xf32, #tpu.memory_space<vmem>>, vector<1x8x128xf32>,
    %cst_21 = arith.constant 2.000000e+00 : f32
    %61 = vector.broadcast %cst_21 : f32 to vector<8x512xf32>
    %62 = arith.cmpf oeq, %26, %61 : vector<8x512xf32>
    %63 = arith.extui %62 : vector<8x512xi1> to vector<8x512xi32>
    %64 = arith.sitofp %63 : vector<8x512xi32> to vector<8x512xf32>
    %65 = vector.extract_strided_slice %64 {offsets = [0, 0], sizes = [8, 128], strides = [1, 1]} : vector<8x512xf32> to vector<8x128xf32>
    %66 = vector.extract_strided_slice %64 {offsets = [0, 128], sizes = [8, 128], strides = [1, 1]} : vector<8x512xf32> to vector<8x128xf32>
    %67 = arith.addf %65, %66 : vector<8x128xf32>
    %68 = vector.extract_strided_slice %64 {offsets = [0, 256], sizes = [8, 128], strides = [1, 1]} : vector<8x512xf32> to vector<8x128xf32>
    %69 = arith.addf %67, %68 : vector<8x128xf32>
    %70 = vector.extract_strided_slice %64 {offsets = [0, 384], sizes = [8, 128], strides = [1, 1]} : vector<8x512xf32> to vector<8x128xf32>
    %71 = arith.addf %69, %70 : vector<8x128xf32>
    %c2 = arith.constant 2 : index
    %c0_22 = arith.constant 0 : index
    %c0_23 = arith.constant 0 : index
    %72 = vector.load %arg5[%c2, %c0_22, %c0_23] : memref<16x8x128xf32, #tpu.memory_space<vmem>>, vector<1x8x128xf32>
    %73 = vector.shape_cast %72 : vector<1x8x128xf32> to vector<8x128xf32>
    %74 = arith.addf %73, %71 : vector<8x128xf32>
    %c2_24 = arith.constant 2 : index
    %c0_25 = arith.constant 0 : index
    %c0_26 = arith.constant 0 : index
    %75 = vector.load %arg5[%c2_24, %c0_25, %c0_26] : memref<16x8x128xf32, #tpu.memory_space<vmem>>, vector<1x8x128xf32>
    %76 = vector.shape_cast %75 : vector<1x8x128xf32> to vector<8x128xf32>
    %77 = vector.shape_cast %74 : vector<8x128xf32> to vector<1x8x128xf32>
    tpu.vector_store %arg5[%c2_24, %c0_25, %c0_26], %77 {strides = array<i32>} : memref<16x8x128xf32, #tpu.memory_space<vmem>>, vector<1x8x128xf32>,
    %cst_27 = arith.constant 3.000000e+00 : f32
    %78 = vector.broadcast %cst_27 : f32 to vector<8x512xf32>
    %79 = arith.cmpf oeq, %26, %78 : vector<8x512xf32>
    %80 = arith.extui %79 : vector<8x512xi1> to vector<8x512xi32>
    %81 = arith.sitofp %80 : vector<8x512xi32> to vector<8x512xf32>
    %82 = vector.extract_strided_slice %81 {offsets = [0, 0], sizes = [8, 128], strides = [1, 1]} : vector<8x512xf32> to vector<8x128xf32>
    %83 = vector.extract_strided_slice %81 {offsets = [0, 128], sizes = [8, 128], strides = [1, 1]} : vector<8x512xf32> to vector<8x128xf32>
    %84 = arith.addf %82, %83 : vector<8x128xf32>
    %85 = vector.extract_strided_slice %81 {offsets = [0, 256], sizes = [8, 128], strides = [1, 1]} : vector<8x512xf32> to vector<8x128xf32>
    %86 = arith.addf %84, %85 : vector<8x128xf32>
    %87 = vector.extract_strided_slice %81 {offsets = [0, 384], sizes = [8, 128], strides = [1, 1]} : vector<8x512xf32> to vector<8x128xf32>
    %88 = arith.addf %86, %87 : vector<8x128xf32>
    %c3 = arith.constant 3 : index
    %c0_28 = arith.constant 0 : index
    %c0_29 = arith.constant 0 : index
    %89 = vector.load %arg5[%c3, %c0_28, %c0_29] : memref<16x8x128xf32, #tpu.memory_space<vmem>>, vector<1x8x128xf32>
    %90 = vector.shape_cast %89 : vector<1x8x128xf32> to vector<8x128xf32>
    %91 = arith.addf %90, %88 : vector<8x128xf32>
    %c3_30 = arith.constant 3 : index
    %c0_31 = arith.constant 0 : index
    %c0_32 = arith.constant 0 : index
    %92 = vector.load %arg5[%c3_30, %c0_31, %c0_32] : memref<16x8x128xf32, #tpu.memory_space<vmem>>, vector<1x8x128xf32>
    %93 = vector.shape_cast %92 : vector<1x8x128xf32> to vector<8x128xf32>
    %94 = vector.shape_cast %91 : vector<8x128xf32> to vector<1x8x128xf32>
    tpu.vector_store %arg5[%c3_30, %c0_31, %c0_32], %94 {strides = array<i32>} : memref<16x8x128xf32, #tpu.memory_space<vmem>>, vector<1x8x128xf32>,
    %cst_33 = arith.constant 4.000000e+00 : f32
    %95 = vector.broadcast %cst_33 : f32 to vector<8x512xf32>
    %96 = arith.cmpf oeq, %26, %95 : vector<8x512xf32>
    %97 = arith.extui %96 : vector<8x512xi1> to vector<8x512xi32>
    %98 = arith.sitofp %97 : vector<8x512xi32> to vector<8x512xf32>
    %99 = vector.extract_strided_slice %98 {offsets = [0, 0], sizes = [8, 128], strides = [1, 1]} : vector<8x512xf32> to vector<8x128xf32>
    %100 = vector.extract_strided_slice %98 {offsets = [0, 128], sizes = [8, 128], strides = [1, 1]} : vector<8x512xf32> to vector<8x128xf32>
    %101 = arith.addf %99, %100 : vector<8x128xf32>
    %102 = vector.extract_strided_slice %98 {offsets = [0, 256], sizes = [8, 128], strides = [1, 1]} : vector<8x512xf32> to vector<8x128xf32>
    %103 = arith.addf %101, %102 : vector<8x128xf32>
    %104 = vector.extract_strided_slice %98 {offsets = [0, 384], sizes = [8, 128], strides = [1, 1]} : vector<8x512xf32> to vector<8x128xf32>
    %105 = arith.addf %103, %104 : vector<8x128xf32>
    %c4 = arith.constant 4 : index
    %c0_34 = arith.constant 0 : index
    %c0_35 = arith.constant 0 : index
    %106 = vector.load %arg5[%c4, %c0_34, %c0_35] : memref<16x8x128xf32, #tpu.memory_space<vmem>>, vector<1x8x128xf32>
    %107 = vector.shape_cast %106 : vector<1x8x128xf32> to vector<8x128xf32>
    %108 = arith.addf %107, %105 : vector<8x128xf32>
    %c4_36 = arith.constant 4 : index
    %c0_37 = arith.constant 0 : index
    %c0_38 = arith.constant 0 : index
    %109 = vector.load %arg5[%c4_36, %c0_37, %c0_38] : memref<16x8x128xf32, #tpu.memory_space<vmem>>, vector<1x8x128xf32>
    %110 = vector.shape_cast %109 : vector<1x8x128xf32> to vector<8x128xf32>
    %111 = vector.shape_cast %108 : vector<8x128xf32> to vector<1x8x128xf32>
    tpu.vector_store %arg5[%c4_36, %c0_37, %c0_38], %111 {strides = array<i32>} : memref<16x8x128xf32, #tpu.memory_space<vmem>>, vector<1x8x128xf32>,
    %cst_39 = arith.constant 5.000000e+00 : f32
    %112 = vector.broadcast %cst_39 : f32 to vector<8x512xf32>
    %113 = arith.cmpf oeq, %26, %112 : vector<8x512xf32>
    %114 = arith.extui %113 : vector<8x512xi1> to vector<8x512xi32>
    %115 = arith.sitofp %114 : vector<8x512xi32> to vector<8x512xf32>
    %116 = vector.extract_strided_slice %115 {offsets = [0, 0], sizes = [8, 128], strides = [1, 1]} : vector<8x512xf32> to vector<8x128xf32>
    %117 = vector.extract_strided_slice %115 {offsets = [0, 128], sizes = [8, 128], strides = [1, 1]} : vector<8x512xf32> to vector<8x128xf32>
    %118 = arith.addf %116, %117 : vector<8x128xf32>
    %119 = vector.extract_strided_slice %115 {offsets = [0, 256], sizes = [8, 128], strides = [1, 1]} : vector<8x512xf32> to vector<8x128xf32>
    %120 = arith.addf %118, %119 : vector<8x128xf32>
    %121 = vector.extract_strided_slice %115 {offsets = [0, 384], sizes = [8, 128], strides = [1, 1]} : vector<8x512xf32> to vector<8x128xf32>
    %122 = arith.addf %120, %121 : vector<8x128xf32>
    %c5 = arith.constant 5 : index
    %c0_40 = arith.constant 0 : index
    %c0_41 = arith.constant 0 : index
    %123 = vector.load %arg5[%c5, %c0_40, %c0_41] : memref<16x8x128xf32, #tpu.memory_space<vmem>>, vector<1x8x128xf32>
    %124 = vector.shape_cast %123 : vector<1x8x128xf32> to vector<8x128xf32>
    %125 = arith.addf %124, %122 : vector<8x128xf32>
    %c5_42 = arith.constant 5 : index
    %c0_43 = arith.constant 0 : index
    %c0_44 = arith.constant 0 : index
    %126 = vector.load %arg5[%c5_42, %c0_43, %c0_44] : memref<16x8x128xf32, #tpu.memory_space<vmem>>, vector<1x8x128xf32>
    %127 = vector.shape_cast %126 : vector<1x8x128xf32> to vector<8x128xf32>
    %128 = vector.shape_cast %125 : vector<8x128xf32> to vector<1x8x128xf32>
    tpu.vector_store %arg5[%c5_42, %c0_43, %c0_44], %128 {strides = array<i32>} : memref<16x8x128xf32, #tpu.memory_space<vmem>>, vector<1x8x128xf32>,
    %cst_45 = arith.constant 6.000000e+00 : f32
    %129 = vector.broadcast %cst_45 : f32 to vector<8x512xf32>
    %130 = arith.cmpf oeq, %26, %129 : vector<8x512xf32>
    %131 = arith.extui %130 : vector<8x512xi1> to vector<8x512xi32>
    %132 = arith.sitofp %131 : vector<8x512xi32> to vector<8x512xf32>
    %133 = vector.extract_strided_slice %132 {offsets = [0, 0], sizes = [8, 128], strides = [1, 1]} : vector<8x512xf32> to vector<8x128xf32>
    %134 = vector.extract_strided_slice %132 {offsets = [0, 128], sizes = [8, 128], strides = [1, 1]} : vector<8x512xf32> to vector<8x128xf32>
    %135 = arith.addf %133, %134 : vector<8x128xf32>
    %136 = vector.extract_strided_slice %132 {offsets = [0, 256], sizes = [8, 128], strides = [1, 1]} : vector<8x512xf32> to vector<8x128xf32>
    %137 = arith.addf %135, %136 : vector<8x128xf32>
    %138 = vector.extract_strided_slice %132 {offsets = [0, 384], sizes = [8, 128], strides = [1, 1]} : vector<8x512xf32> to vector<8x128xf32>
    %139 = arith.addf %137, %138 : vector<8x128xf32>
    %c6 = arith.constant 6 : index
    %c0_46 = arith.constant 0 : index
    %c0_47 = arith.constant 0 : index
    %140 = vector.load %arg5[%c6, %c0_46, %c0_47] : memref<16x8x128xf32, #tpu.memory_space<vmem>>, vector<1x8x128xf32>
    %141 = vector.shape_cast %140 : vector<1x8x128xf32> to vector<8x128xf32>
    %142 = arith.addf %141, %139 : vector<8x128xf32>
    %c6_48 = arith.constant 6 : index
    %c0_49 = arith.constant 0 : index
    %c0_50 = arith.constant 0 : index
    %143 = vector.load %arg5[%c6_48, %c0_49, %c0_50] : memref<16x8x128xf32, #tpu.memory_space<vmem>>, vector<1x8x128xf32>
    %144 = vector.shape_cast %143 : vector<1x8x128xf32> to vector<8x128xf32>
    %145 = vector.shape_cast %142 : vector<8x128xf32> to vector<1x8x128xf32>
    tpu.vector_store %arg5[%c6_48, %c0_49, %c0_50], %145 {strides = array<i32>} : memref<16x8x128xf32, #tpu.memory_space<vmem>>, vector<1x8x128xf32>,
    %cst_51 = arith.constant 7.000000e+00 : f32
    %146 = vector.broadcast %cst_51 : f32 to vector<8x512xf32>
    %147 = arith.cmpf oeq, %26, %146 : vector<8x512xf32>
    %148 = arith.extui %147 : vector<8x512xi1> to vector<8x512xi32>
    %149 = arith.sitofp %148 : vector<8x512xi32> to vector<8x512xf32>
    %150 = vector.extract_strided_slice %149 {offsets = [0, 0], sizes = [8, 128], strides = [1, 1]} : vector<8x512xf32> to vector<8x128xf32>
    %151 = vector.extract_strided_slice %149 {offsets = [0, 128], sizes = [8, 128], strides = [1, 1]} : vector<8x512xf32> to vector<8x128xf32>
    %152 = arith.addf %150, %151 : vector<8x128xf32>
    %153 = vector.extract_strided_slice %149 {offsets = [0, 256], sizes = [8, 128], strides = [1, 1]} : vector<8x512xf32> to vector<8x128xf32>
    %154 = arith.addf %152, %153 : vector<8x128xf32>
    %155 = vector.extract_strided_slice %149 {offsets = [0, 384], sizes = [8, 128], strides = [1, 1]} : vector<8x512xf32> to vector<8x128xf32>
    %156 = arith.addf %154, %155 : vector<8x128xf32>
    %c7 = arith.constant 7 : index
    %c0_52 = arith.constant 0 : index
    %c0_53 = arith.constant 0 : index
    %157 = vector.load %arg5[%c7, %c0_52, %c0_53] : memref<16x8x128xf32, #tpu.memory_space<vmem>>, vector<1x8x128xf32>
    %158 = vector.shape_cast %157 : vector<1x8x128xf32> to vector<8x128xf32>
    %159 = arith.addf %158, %156 : vector<8x128xf32>
    %c7_54 = arith.constant 7 : index
    %c0_55 = arith.constant 0 : index
    %c0_56 = arith.constant 0 : index
    %160 = vector.load %arg5[%c7_54, %c0_55, %c0_56] : memref<16x8x128xf32, #tpu.memory_space<vmem>>, vector<1x8x128xf32>
    %161 = vector.shape_cast %160 : vector<1x8x128xf32> to vector<8x128xf32>
    %162 = vector.shape_cast %159 : vector<8x128xf32> to vector<1x8x128xf32>
    tpu.vector_store %arg5[%c7_54, %c0_55, %c0_56], %162 {strides = array<i32>} : memref<16x8x128xf32, #tpu.memory_space<vmem>>, vector<1x8x128xf32>,
    %cst_57 = arith.constant 8.000000e+00 : f32
    %163 = vector.broadcast %cst_57 : f32 to vector<8x512xf32>
    %164 = arith.cmpf oeq, %26, %163 : vector<8x512xf32>
    %165 = arith.extui %164 : vector<8x512xi1> to vector<8x512xi32>
    %166 = arith.sitofp %165 : vector<8x512xi32> to vector<8x512xf32>
    %167 = vector.extract_strided_slice %166 {offsets = [0, 0], sizes = [8, 128], strides = [1, 1]} : vector<8x512xf32> to vector<8x128xf32>
    %168 = vector.extract_strided_slice %166 {offsets = [0, 128], sizes = [8, 128], strides = [1, 1]} : vector<8x512xf32> to vector<8x128xf32>
    %169 = arith.addf %167, %168 : vector<8x128xf32>
    %170 = vector.extract_strided_slice %166 {offsets = [0, 256], sizes = [8, 128], strides = [1, 1]} : vector<8x512xf32> to vector<8x128xf32>
    %171 = arith.addf %169, %170 : vector<8x128xf32>
    %172 = vector.extract_strided_slice %166 {offsets = [0, 384], sizes = [8, 128], strides = [1, 1]} : vector<8x512xf32> to vector<8x128xf32>
    %173 = arith.addf %171, %172 : vector<8x128xf32>
    %c8 = arith.constant 8 : index
    %c0_58 = arith.constant 0 : index
    %c0_59 = arith.constant 0 : index
    %174 = vector.load %arg5[%c8, %c0_58, %c0_59] : memref<16x8x128xf32, #tpu.memory_space<vmem>>, vector<1x8x128xf32>
    %175 = vector.shape_cast %174 : vector<1x8x128xf32> to vector<8x128xf32>
    %176 = arith.addf %175, %173 : vector<8x128xf32>
    %c8_60 = arith.constant 8 : index
    %c0_61 = arith.constant 0 : index
    %c0_62 = arith.constant 0 : index
    %177 = vector.load %arg5[%c8_60, %c0_61, %c0_62] : memref<16x8x128xf32, #tpu.memory_space<vmem>>, vector<1x8x128xf32>
    %178 = vector.shape_cast %177 : vector<1x8x128xf32> to vector<8x128xf32>
    %179 = vector.shape_cast %176 : vector<8x128xf32> to vector<1x8x128xf32>
    tpu.vector_store %arg5[%c8_60, %c0_61, %c0_62], %179 {strides = array<i32>} : memref<16x8x128xf32, #tpu.memory_space<vmem>>, vector<1x8x128xf32>,
    %cst_63 = arith.constant 9.000000e+00 : f32
    %180 = vector.broadcast %cst_63 : f32 to vector<8x512xf32>
    %181 = arith.cmpf oeq, %26, %180 : vector<8x512xf32>
    %182 = arith.extui %181 : vector<8x512xi1> to vector<8x512xi32>
    %183 = arith.sitofp %182 : vector<8x512xi32> to vector<8x512xf32>
    %184 = vector.extract_strided_slice %183 {offsets = [0, 0], sizes = [8, 128], strides = [1, 1]} : vector<8x512xf32> to vector<8x128xf32>
    %185 = vector.extract_strided_slice %183 {offsets = [0, 128], sizes = [8, 128], strides = [1, 1]} : vector<8x512xf32> to vector<8x128xf32>
    %186 = arith.addf %184, %185 : vector<8x128xf32>
    %187 = vector.extract_strided_slice %183 {offsets = [0, 256], sizes = [8, 128], strides = [1, 1]} : vector<8x512xf32> to vector<8x128xf32>
    %188 = arith.addf %186, %187 : vector<8x128xf32>
    %189 = vector.extract_strided_slice %183 {offsets = [0, 384], sizes = [8, 128], strides = [1, 1]} : vector<8x512xf32> to vector<8x128xf32>
    %190 = arith.addf %188, %189 : vector<8x128xf32>
    %c9 = arith.constant 9 : index
    %c0_64 = arith.constant 0 : index
    %c0_65 = arith.constant 0 : index
    %191 = vector.load %arg5[%c9, %c0_64, %c0_65] : memref<16x8x128xf32, #tpu.memory_space<vmem>>, vector<1x8x128xf32>
    %192 = vector.shape_cast %191 : vector<1x8x128xf32> to vector<8x128xf32>
    %193 = arith.addf %192, %190 : vector<8x128xf32>
    %c9_66 = arith.constant 9 : index
    %c0_67 = arith.constant 0 : index
    %c0_68 = arith.constant 0 : index
    %194 = vector.load %arg5[%c9_66, %c0_67, %c0_68] : memref<16x8x128xf32, #tpu.memory_space<vmem>>, vector<1x8x128xf32>
    %195 = vector.shape_cast %194 : vector<1x8x128xf32> to vector<8x128xf32>
    %196 = vector.shape_cast %193 : vector<8x128xf32> to vector<1x8x128xf32>
    tpu.vector_store %arg5[%c9_66, %c0_67, %c0_68], %196 {strides = array<i32>} : memref<16x8x128xf32, #tpu.memory_space<vmem>>, vector<1x8x128xf32>,
    %cst_69 = arith.constant 1.000000e+01 : f32
    %197 = vector.broadcast %cst_69 : f32 to vector<8x512xf32>
    %198 = arith.cmpf oeq, %26, %197 : vector<8x512xf32>
    %199 = arith.extui %198 : vector<8x512xi1> to vector<8x512xi32>
    %200 = arith.sitofp %199 : vector<8x512xi32> to vector<8x512xf32>
    %201 = vector.extract_strided_slice %200 {offsets = [0, 0], sizes = [8, 128], strides = [1, 1]} : vector<8x512xf32> to vector<8x128xf32>
    %202 = vector.extract_strided_slice %200 {offsets = [0, 128], sizes = [8, 128], strides = [1, 1]} : vector<8x512xf32> to vector<8x128xf32>
    %203 = arith.addf %201, %202 : vector<8x128xf32>
    %204 = vector.extract_strided_slice %200 {offsets = [0, 256], sizes = [8, 128], strides = [1, 1]} : vector<8x512xf32> to vector<8x128xf32>
    %205 = arith.addf %203, %204 : vector<8x128xf32>
    %206 = vector.extract_strided_slice %200 {offsets = [0, 384], sizes = [8, 128], strides = [1, 1]} : vector<8x512xf32> to vector<8x128xf32>
    %207 = arith.addf %205, %206 : vector<8x128xf32>
    %c10 = arith.constant 10 : index
    %c0_70 = arith.constant 0 : index
    %c0_71 = arith.constant 0 : index
    %208 = vector.load %arg5[%c10, %c0_70, %c0_71] : memref<16x8x128xf32, #tpu.memory_space<vmem>>, vector<1x8x128xf32>
    %209 = vector.shape_cast %208 : vector<1x8x128xf32> to vector<8x128xf32>
    %210 = arith.addf %209, %207 : vector<8x128xf32>
    %c10_72 = arith.constant 10 : index
    %c0_73 = arith.constant 0 : index
    %c0_74 = arith.constant 0 : index
    %211 = vector.load %arg5[%c10_72, %c0_73, %c0_74] : memref<16x8x128xf32, #tpu.memory_space<vmem>>, vector<1x8x128xf32>
    %212 = vector.shape_cast %211 : vector<1x8x128xf32> to vector<8x128xf32>
    %213 = vector.shape_cast %210 : vector<8x128xf32> to vector<1x8x128xf32>
    tpu.vector_store %arg5[%c10_72, %c0_73, %c0_74], %213 {strides = array<i32>} : memref<16x8x128xf32, #tpu.memory_space<vmem>>, vector<1x8x128xf32>,
    %cst_75 = arith.constant 1.100000e+01 : f32
    %214 = vector.broadcast %cst_75 : f32 to vector<8x512xf32>
    %215 = arith.cmpf oeq, %26, %214 : vector<8x512xf32>
    %216 = arith.extui %215 : vector<8x512xi1> to vector<8x512xi32>
    %217 = arith.sitofp %216 : vector<8x512xi32> to vector<8x512xf32>
    %218 = vector.extract_strided_slice %217 {offsets = [0, 0], sizes = [8, 128], strides = [1, 1]} : vector<8x512xf32> to vector<8x128xf32>
    %219 = vector.extract_strided_slice %217 {offsets = [0, 128], sizes = [8, 128], strides = [1, 1]} : vector<8x512xf32> to vector<8x128xf32>
    %220 = arith.addf %218, %219 : vector<8x128xf32>
    %221 = vector.extract_strided_slice %217 {offsets = [0, 256], sizes = [8, 128], strides = [1, 1]} : vector<8x512xf32> to vector<8x128xf32>
    %222 = arith.addf %220, %221 : vector<8x128xf32>
    %223 = vector.extract_strided_slice %217 {offsets = [0, 384], sizes = [8, 128], strides = [1, 1]} : vector<8x512xf32> to vector<8x128xf32>
    %224 = arith.addf %222, %223 : vector<8x128xf32>
    %c11 = arith.constant 11 : index
    %c0_76 = arith.constant 0 : index
    %c0_77 = arith.constant 0 : index
    %225 = vector.load %arg5[%c11, %c0_76, %c0_77] : memref<16x8x128xf32, #tpu.memory_space<vmem>>, vector<1x8x128xf32>
    %226 = vector.shape_cast %225 : vector<1x8x128xf32> to vector<8x128xf32>
    %227 = arith.addf %226, %224 : vector<8x128xf32>
    %c11_78 = arith.constant 11 : index
    %c0_79 = arith.constant 0 : index
    %c0_80 = arith.constant 0 : index
    %228 = vector.load %arg5[%c11_78, %c0_79, %c0_80] : memref<16x8x128xf32, #tpu.memory_space<vmem>>, vector<1x8x128xf32>
    %229 = vector.shape_cast %228 : vector<1x8x128xf32> to vector<8x128xf32>
    %230 = vector.shape_cast %227 : vector<8x128xf32> to vector<1x8x128xf32>
    tpu.vector_store %arg5[%c11_78, %c0_79, %c0_80], %230 {strides = array<i32>} : memref<16x8x128xf32, #tpu.memory_space<vmem>>, vector<1x8x128xf32>,
    %cst_81 = arith.constant 1.200000e+01 : f32
    %231 = vector.broadcast %cst_81 : f32 to vector<8x512xf32>
    %232 = arith.cmpf oeq, %26, %231 : vector<8x512xf32>
    %233 = arith.extui %232 : vector<8x512xi1> to vector<8x512xi32>
    %234 = arith.sitofp %233 : vector<8x512xi32> to vector<8x512xf32>
    %235 = vector.extract_strided_slice %234 {offsets = [0, 0], sizes = [8, 128], strides = [1, 1]} : vector<8x512xf32> to vector<8x128xf32>
    %236 = vector.extract_strided_slice %234 {offsets = [0, 128], sizes = [8, 128], strides = [1, 1]} : vector<8x512xf32> to vector<8x128xf32>
    %237 = arith.addf %235, %236 : vector<8x128xf32>
    %238 = vector.extract_strided_slice %234 {offsets = [0, 256], sizes = [8, 128], strides = [1, 1]} : vector<8x512xf32> to vector<8x128xf32>
    %239 = arith.addf %237, %238 : vector<8x128xf32>
    %240 = vector.extract_strided_slice %234 {offsets = [0, 384], sizes = [8, 128], strides = [1, 1]} : vector<8x512xf32> to vector<8x128xf32>
    %241 = arith.addf %239, %240 : vector<8x128xf32>
    %c12 = arith.constant 12 : index
    %c0_82 = arith.constant 0 : index
    %c0_83 = arith.constant 0 : index
    %242 = vector.load %arg5[%c12, %c0_82, %c0_83] : memref<16x8x128xf32, #tpu.memory_space<vmem>>, vector<1x8x128xf32>
    %243 = vector.shape_cast %242 : vector<1x8x128xf32> to vector<8x128xf32>
    %244 = arith.addf %243, %241 : vector<8x128xf32>
    %c12_84 = arith.constant 12 : index
    %c0_85 = arith.constant 0 : index
    %c0_86 = arith.constant 0 : index
    %245 = vector.load %arg5[%c12_84, %c0_85, %c0_86] : memref<16x8x128xf32, #tpu.memory_space<vmem>>, vector<1x8x128xf32>
    %246 = vector.shape_cast %245 : vector<1x8x128xf32> to vector<8x128xf32>
    %247 = vector.shape_cast %244 : vector<8x128xf32> to vector<1x8x128xf32>
    tpu.vector_store %arg5[%c12_84, %c0_85, %c0_86], %247 {strides = array<i32>} : memref<16x8x128xf32, #tpu.memory_space<vmem>>, vector<1x8x128xf32>,
    %cst_87 = arith.constant 1.300000e+01 : f32
    %248 = vector.broadcast %cst_87 : f32 to vector<8x512xf32>
    %249 = arith.cmpf oeq, %26, %248 : vector<8x512xf32>
    %250 = arith.extui %249 : vector<8x512xi1> to vector<8x512xi32>
    %251 = arith.sitofp %250 : vector<8x512xi32> to vector<8x512xf32>
    %252 = vector.extract_strided_slice %251 {offsets = [0, 0], sizes = [8, 128], strides = [1, 1]} : vector<8x512xf32> to vector<8x128xf32>
    %253 = vector.extract_strided_slice %251 {offsets = [0, 128], sizes = [8, 128], strides = [1, 1]} : vector<8x512xf32> to vector<8x128xf32>
    %254 = arith.addf %252, %253 : vector<8x128xf32>
    %255 = vector.extract_strided_slice %251 {offsets = [0, 256], sizes = [8, 128], strides = [1, 1]} : vector<8x512xf32> to vector<8x128xf32>
    %256 = arith.addf %254, %255 : vector<8x128xf32>
    %257 = vector.extract_strided_slice %251 {offsets = [0, 384], sizes = [8, 128], strides = [1, 1]} : vector<8x512xf32> to vector<8x128xf32>
    %258 = arith.addf %256, %257 : vector<8x128xf32>
    %c13 = arith.constant 13 : index
    %c0_88 = arith.constant 0 : index
    %c0_89 = arith.constant 0 : index
    %259 = vector.load %arg5[%c13, %c0_88, %c0_89] : memref<16x8x128xf32, #tpu.memory_space<vmem>>, vector<1x8x128xf32>
    %260 = vector.shape_cast %259 : vector<1x8x128xf32> to vector<8x128xf32>
    %261 = arith.addf %260, %258 : vector<8x128xf32>
    %c13_90 = arith.constant 13 : index
    %c0_91 = arith.constant 0 : index
    %c0_92 = arith.constant 0 : index
    %262 = vector.load %arg5[%c13_90, %c0_91, %c0_92] : memref<16x8x128xf32, #tpu.memory_space<vmem>>, vector<1x8x128xf32>
    %263 = vector.shape_cast %262 : vector<1x8x128xf32> to vector<8x128xf32>
    %264 = vector.shape_cast %261 : vector<8x128xf32> to vector<1x8x128xf32>
    tpu.vector_store %arg5[%c13_90, %c0_91, %c0_92], %264 {strides = array<i32>} : memref<16x8x128xf32, #tpu.memory_space<vmem>>, vector<1x8x128xf32>,
    %cst_93 = arith.constant 1.400000e+01 : f32
    %265 = vector.broadcast %cst_93 : f32 to vector<8x512xf32>
    %266 = arith.cmpf oeq, %26, %265 : vector<8x512xf32>
    %267 = arith.extui %266 : vector<8x512xi1> to vector<8x512xi32>
    %268 = arith.sitofp %267 : vector<8x512xi32> to vector<8x512xf32>
    %269 = vector.extract_strided_slice %268 {offsets = [0, 0], sizes = [8, 128], strides = [1, 1]} : vector<8x512xf32> to vector<8x128xf32>
    %270 = vector.extract_strided_slice %268 {offsets = [0, 128], sizes = [8, 128], strides = [1, 1]} : vector<8x512xf32> to vector<8x128xf32>
    %271 = arith.addf %269, %270 : vector<8x128xf32>
    %272 = vector.extract_strided_slice %268 {offsets = [0, 256], sizes = [8, 128], strides = [1, 1]} : vector<8x512xf32> to vector<8x128xf32>
    %273 = arith.addf %271, %272 : vector<8x128xf32>
    %274 = vector.extract_strided_slice %268 {offsets = [0, 384], sizes = [8, 128], strides = [1, 1]} : vector<8x512xf32> to vector<8x128xf32>
    %275 = arith.addf %273, %274 : vector<8x128xf32>
    %c14 = arith.constant 14 : index
    %c0_94 = arith.constant 0 : index
    %c0_95 = arith.constant 0 : index
    %276 = vector.load %arg5[%c14, %c0_94, %c0_95] : memref<16x8x128xf32, #tpu.memory_space<vmem>>, vector<1x8x128xf32>
    %277 = vector.shape_cast %276 : vector<1x8x128xf32> to vector<8x128xf32>
    %278 = arith.addf %277, %275 : vector<8x128xf32>
    %c14_96 = arith.constant 14 : index
    %c0_97 = arith.constant 0 : index
    %c0_98 = arith.constant 0 : index
    %279 = vector.load %arg5[%c14_96, %c0_97, %c0_98] : memref<16x8x128xf32, #tpu.memory_space<vmem>>, vector<1x8x128xf32>
    %280 = vector.shape_cast %279 : vector<1x8x128xf32> to vector<8x128xf32>
    %281 = vector.shape_cast %278 : vector<8x128xf32> to vector<1x8x128xf32>
    tpu.vector_store %arg5[%c14_96, %c0_97, %c0_98], %281 {strides = array<i32>} : memref<16x8x128xf32, #tpu.memory_space<vmem>>, vector<1x8x128xf32>,
    %cst_99 = arith.constant 1.500000e+01 : f32
    %282 = vector.broadcast %cst_99 : f32 to vector<8x512xf32>
    %283 = arith.cmpf oeq, %26, %282 : vector<8x512xf32>
    %284 = arith.extui %283 : vector<8x512xi1> to vector<8x512xi32>
    %285 = arith.sitofp %284 : vector<8x512xi32> to vector<8x512xf32>
    %286 = vector.extract_strided_slice %285 {offsets = [0, 0], sizes = [8, 128], strides = [1, 1]} : vector<8x512xf32> to vector<8x128xf32>
    %287 = vector.extract_strided_slice %285 {offsets = [0, 128], sizes = [8, 128], strides = [1, 1]} : vector<8x512xf32> to vector<8x128xf32>
    %288 = arith.addf %286, %287 : vector<8x128xf32>
    %289 = vector.extract_strided_slice %285 {offsets = [0, 256], sizes = [8, 128], strides = [1, 1]} : vector<8x512xf32> to vector<8x128xf32>
    %290 = arith.addf %288, %289 : vector<8x128xf32>
    %291 = vector.extract_strided_slice %285 {offsets = [0, 384], sizes = [8, 128], strides = [1, 1]} : vector<8x512xf32> to vector<8x128xf32>
    %292 = arith.addf %290, %291 : vector<8x128xf32>
    %c15 = arith.constant 15 : index
    %c0_100 = arith.constant 0 : index
    %c0_101 = arith.constant 0 : index
    %293 = vector.load %arg5[%c15, %c0_100, %c0_101] : memref<16x8x128xf32, #tpu.memory_space<vmem>>, vector<1x8x128xf32>
    %294 = vector.shape_cast %293 : vector<1x8x128xf32> to vector<8x128xf32>
    %295 = arith.addf %294, %292 : vector<8x128xf32>
    %c15_102 = arith.constant 15 : index
    %c0_103 = arith.constant 0 : index
    %c0_104 = arith.constant 0 : index
    %296 = vector.load %arg5[%c15_102, %c0_103, %c0_104] : memref<16x8x128xf32, #tpu.memory_space<vmem>>, vector<1x8x128xf32>
    %297 = vector.shape_cast %296 : vector<1x8x128xf32> to vector<8x128xf32>
    %298 = vector.shape_cast %295 : vector<8x128xf32> to vector<1x8x128xf32>
    tpu.vector_store %arg5[%c15_102, %c0_103, %c0_104], %298 {strides = array<i32>} : memref<16x8x128xf32, #tpu.memory_space<vmem>>, vector<1x8x128xf32>,
    %c0_i32_105 = arith.constant 0 : i32
    %299 = arith.cmpi eq, %arg2, %c0_i32_105 : i32
    %300 = arith.extui %299 : i1 to i32
    %c0_i32_106 = arith.constant 0 : i32
    %301 = arith.cmpi ne, %300, %c0_i32_106 : i32
    scf.if %301 {
      %c0_107 = arith.constant 0 : index
      %c0_108 = arith.constant 0 : index
      %c0_109 = arith.constant 0 : index
      %302 = vector.load %arg5[%c0_107, %c0_108, %c0_109] : memref<16x8x128xf32, #tpu.memory_space<vmem>>, vector<16x8x128xf32>
      %cst_110 = arith.constant dense<0.000000e+00> : vector<16x8xf32>
      %303 = vector.multi_reduction <add>, %302, %cst_110 [2] : vector<16x8x128xf32> to vector<16x8xf32>
      %c0_111 = arith.constant 0 : index
      %c0_112 = arith.constant 0 : index
      %c0_113 = arith.constant 0 : index
      %304 = vector.load %arg4[%c0_111, %c0_112, %c0_113] : memref<1x16x8xf32, #tpu.memory_space<vmem>>, vector<1x16x8xf32>
      %305 = vector.shape_cast %304 : vector<1x16x8xf32> to vector<16x8xf32>
      %306 = vector.shape_cast %303 : vector<16x8xf32> to vector<1x16x8xf32>
      tpu.vector_store %arg4[%c0_111, %c0_112, %c0_113], %306 {strides = array<i32>} : memref<1x16x8xf32, #tpu.memory_space<vmem>>, vector<1x16x8xf32>,
    } else {
    }
    return
  }
  func.func @transform_0(%arg0: i32, %arg1: i32, %arg2: i32) -> (i32, i32) {
    %c1_i32 = arith.constant 1 : i32
    %0 = arith.muli %arg0, %c1_i32 : i32
    %1 = arith.addi %0, %arg2 : i32
    %c0_i32 = arith.constant 0 : i32
    return %arg1, %1 : i32, i32
  }
  func.func @transform_1(%arg0: i32, %arg1: i32, %arg2: i32) -> (i32, i32, i32) {
    %c0_i32 = arith.constant 0 : i32
    %c0_i32_0 = arith.constant 0 : i32
    return %arg0, %c0_i32, %arg1 : i32, i32, i32
  }
}

</mosaic_0001>

<llo_original>
// kernel: tpu_custom_call.1
$region0: #{tpu_custom_call.1}
  #allocation0 [shape = 'u32[]', space=smem, size = 0x4, offset = 0x4, fixed_abs, tag = 'smem constant byte address 0x4 - core index']
  #allocation1 [shape = 'u32[144,128]{1,0:T(1,128)}', space=vmem, size = 0x12000, scoped, tag = 'internal scratch']
  #allocation2 [shape = 'f32[16,8,128]{2,1,0:T(8,128)}', space=vmem, size = 0x10000, scoped, tag = 'scratch operand']
  %s0 = inlined_call_operand.hbm [shape: f32[8,256], index: 0, kind: input, shape index: {}]
  %s1 = inlined_call_operand.vmem [shape: f32[1,16,8], index: 1, kind: output, shape index: {}]
  %s2 = sld [smem:[#allocation0]]
  $region26: #{tpu_custom_call.1} parent=0
    _
  %s4 = ssub.s32 1, %s2
  %s5 = scalar_select 0, %s4, %s2
  $region1: #{tpu_custom_call.1} parent=0
    #allocation3 [shape = 'u8[16384]{0}', space=vmem, size = 0x4000, scoped, tag = 'input window, operand 0, single buffered']
    #allocation4 [shape = 's32[1]{0}', space=sflag, size = 0x4, scoped, tag = 'scoped memory for tpu_custom_call.1']
    %6 = vsyncpa [#allocation4], 0
    // Predicated region
    $region2: #{tpu_custom_call.1} parent=1 // pred_check
      _
    $region3: #{tpu_custom_call.1} parent=1 // pred_check_branch
      %8 = sbr.rel (0) target = $region5
    $region4: #{tpu_custom_call.1} parent=1 // pred_region
      %s9 = sadd.s32 0, 0
      %s10 = smul.u32 4, %s9
      %s11 = ssub.s32 2, %s10
      %s12 = smul.u32 128, %s11
      %s14 = ssub.s32 512, %s12
      %15 = vsyncadd [#allocation4], %s14
      %p16 = scmp.ne.s32.totalorder 0, %s12
      %s17 = smul.addr %s10, 128
      %s18 = scalar_lea.hbm %s0, %s17
      %s19 = smul.u32 %s11, 8
      %s20 = sshll.u32 %s19, 4
      %s21 = sshll.u32 [#allocation3], 4
      %s22 = int_to_ptr.vmem [resolvable:$true] %s21
      %24 = dma.hbm_to_vmem [thread:$0]  (%p16), %s18, %s20, %s22, [#allocation4]
    $region5: #{tpu_custom_call.1} parent=1 // pred_fallthru
      _
    // Predicated region
    $region6: #{tpu_custom_call.1} parent=1 // pred_check
      _
    $region7: #{tpu_custom_call.1} parent=1 // pred_check_branch
      %26 = sbr.rel (0) target = $region9
    $region8: #{tpu_custom_call.1} parent=1 // pred_region
      %27 = dma.done [#allocation4], 512
    $region9: #{tpu_custom_call.1} parent=1 // pred_fallthru
      _
    %s28 = sadd.s32 0, 0
    %s29 = smul.u32 4, %s28
    %s30 = ssub.s32 2, %s29
    %s31 = smul.u32 128, %s30
    %p32 = scmp.eq.s32.totalorder 0, 0
    // Predicated region
    $region10: #{tpu_custom_call.1} parent=1 // pred_check
      %p33 = pneg %p32
    $region11: #{tpu_custom_call.1} parent=1 // pred_check_branch
      %35 = sbr.rel (%p33) target = $region13
    $region12: #{tpu_custom_call.1} parent=1 // pred_region
      %36 = vst [vmem:[#allocation2] sm:$0xff] 0.0
      %37 = vst [vmem:[#allocation2 + $0x8] sm:$0xff] 0.0
      %38 = vst [vmem:[#allocation2 + $0x10] sm:$0xff] 0.0
      %39 = vst [vmem:[#allocation2 + $0x18] sm:$0xff] 0.0
      %40 = vst [vmem:[#allocation2 + $0x20] sm:$0xff] 0.0
      %41 = vst [vmem:[#allocation2 + $0x28] sm:$0xff] 0.0
      %42 = vst [vmem:[#allocation2 + $0x30] sm:$0xff] 0.0
      %43 = vst [vmem:[#allocation2 + $0x38] sm:$0xff] 0.0
      %44 = vst [vmem:[#allocation2 + $0x40] sm:$0xff] 0.0
      %45 = vst [vmem:[#allocation2 + $0x48] sm:$0xff] 0.0
      %46 = vst [vmem:[#allocation2 + $0x50] sm:$0xff] 0.0
      %47 = vst [vmem:[#allocation2 + $0x58] sm:$0xff] 0.0
      %48 = vst [vmem:[#allocation2 + $0x60] sm:$0xff] 0.0
      %49 = vst [vmem:[#allocation2 + $0x68] sm:$0xff] 0.0
      %50 = vst [vmem:[#allocation2 + $0x70] sm:$0xff] 0.0
      %51 = vst [vmem:[#allocation2 + $0x78] sm:$0xff] 0.0
    $region13: #{tpu_custom_call.1} parent=1 // pred_fallthru
      _
    %s52 = sadd.s32 0, 0
    %s53 = smul.u32 %s52, 512
    %v54 = vlaneseq
    %v55 = vand.u32 %v54, 127
    %v56 = vadd.s32 %v55, 128
    %v57 = vadd.s32 %v55, 256
    %v58 = vadd.s32 %v55, 384
    %v59 = vld [vmem:[#allocation3] sm:$0xff]
    %v60 = vld [vmem:[#allocation3 + $0x8] sm:$0xff]
    %v61 = vld [vmem:[#allocation3 + $0x10] sm:$0xff]
    %v62 = vld [vmem:[#allocation3 + $0x18] sm:$0xff]
    %v63 = vmul.f32 %v59, 4.0
    %v64 = vmul.f32 %v60, 4.0
    %v65 = vmul.f32 %v61, 4.0
    %v66 = vmul.f32 %v62, 4.0
    %v67 = vadd.f32 %v63, 12.0
    %v68 = vadd.f32 %v64, 12.0
    %v69 = vadd.f32 %v65, 12.0
    %v70 = vadd.f32 %v66, 12.0
    %v71 = vfloor.f32 %v67
    %v72 = vfloor.f32 %v68
    %v73 = vfloor.f32 %v69
    %v74 = vfloor.f32 %v70
    %v75 = vmin.f32 %v71, 15.0
    %v76 = vmin.f32 %v72, 15.0
    %v77 = vmin.f32 %v73, 15.0
    %v78 = vmin.f32 %v74, 15.0
    %vm79 = vcmp.ge.f32.partialorder %v59, -3.0
    %vm80 = vcmp.ge.f32.partialorder %v60, -3.0
    %vm81 = vcmp.ge.f32.partialorder %v61, -3.0
    %vm82 = vcmp.ge.f32.partialorder %v62, -3.0
    %vm83 = vcmp.le.f32.partialorder %v59, 1.0
    %vm84 = vcmp.le.f32.partialorder %v60, 1.0
    %vm85 = vcmp.le.f32.partialorder %v61, 1.0
    %vm86 = vcmp.le.f32.partialorder %v62, 1.0
    %vm87 = vmand %vm79, %vm83
    %vm88 = vmand %vm80, %vm84
    %vm89 = vmand %vm81, %vm85
    %vm90 = vmand %vm82, %vm86
    %s91 = ssub.s32 256, %s53
    %v92 = vstv %s91
    %vm93 = vcmp.lt.s32.totalorder %v55, %v92
    %vm94 = vcmp.lt.s32.totalorder %v56, %v92
    %vm95 = vcmp.lt.s32.totalorder %v57, %v92
    %vm96 = vcmp.lt.s32.totalorder %v58, %v92
    %vm97 = vmand %vm87, %vm93
    %vm98 = vmand %vm88, %vm94
    %vm99 = vmand %vm89, %vm95
    %vm100 = vmand %vm90, %vm96
    %v101 = vsel %vm97, %v75, -1.0
    %v102 = vsel %vm98, %v76, -1.0
    %v103 = vsel %vm99, %v77, -1.0
    %v104 = vsel %vm100, %v78, -1.0
    %vm105 = vcmp.eq.f32.partialorder %v101, 0.0
    %vm106 = vcmp.eq.f32.partialorder %v102, 0.0
    %vm107 = vcmp.eq.f32.partialorder %v103, 0.0
    %vm108 = vcmp.eq.f32.partialorder %v104, 0.0
    %v109 = vsel %vm105, 1, 0
    %v110 = vsel %vm106, 1, 0
    %v111 = vsel %vm107, 1, 0
    %v112 = vsel %vm108, 1, 0
    %v113 = vcvt.s32.f32 %v109
    %v114 = vcvt.s32.f32 %v110
    %v115 = vcvt.s32.f32 %v111
    %v116 = vcvt.s32.f32 %v112
    %v117 = vadd.f32 %v113, %v114
    %v118 = vadd.f32 %v117, %v115
    %v119 = vadd.f32 %v118, %v116
    %v120 = vld [vmem:[#allocation2] sm:$0xff]
    %v121 = vadd.f32 %v120, %v119
    %122 = vst [vmem:[#allocation2] sm:$0xff] %v121
    %vm123 = vcmp.eq.f32.partialorder %v101, 1.0
    %vm124 = vcmp.eq.f32.partialorder %v102, 1.0
    %vm125 = vcmp.eq.f32.partialorder %v103, 1.0
    %vm126 = vcmp.eq.f32.partialorder %v104, 1.0
    %v127 = vsel %vm123, 1, 0
    %v128 = vsel %vm124, 1, 0
    %v129 = vsel %vm125, 1, 0
    %v130 = vsel %vm126, 1, 0
    %v131 = vcvt.s32.f32 %v127
    %v132 = vcvt.s32.f32 %v128
    %v133 = vcvt.s32.f32 %v129
    %v134 = vcvt.s32.f32 %v130
    %v135 = vadd.f32 %v131, %v132
    %v136 = vadd.f32 %v135, %v133
    %v137 = vadd.f32 %v136, %v134
    %s138 = scalar_lea.vmem [#allocation2], 8
    %v139 = vld [vmem:[%s138] sm:$0xff]
    %v140 = vadd.f32 %v139, %v137
    %141 = vst [vmem:[%s138] sm:$0xff] %v140
    %vm142 = vcmp.eq.f32.partialorder %v101, 2.0
    %vm143 = vcmp.eq.f32.partialorder %v102, 2.0
    %vm144 = vcmp.eq.f32.partialorder %v103, 2.0
    %vm145 = vcmp.eq.f32.partialorder %v104, 2.0
    %v146 = vsel %vm142, 1, 0
    %v147 = vsel %vm143, 1, 0
    %v148 = vsel %vm144, 1, 0
    %v149 = vsel %vm145, 1, 0
    %v150 = vcvt.s32.f32 %v146
    %v151 = vcvt.s32.f32 %v147
    %v152 = vcvt.s32.f32 %v148
    %v153 = vcvt.s32.f32 %v149
    %v154 = vadd.f32 %v150, %v151
    %v155 = vadd.f32 %v154, %v152
    %v156 = vadd.f32 %v155, %v153
    %s157 = scalar_lea.vmem [#allocation2], 16
    %v158 = vld [vmem:[%s157] sm:$0xff]
    %v159 = vadd.f32 %v158, %v156
    %160 = vst [vmem:[%s157] sm:$0xff] %v159
    %vm161 = vcmp.eq.f32.partialorder %v101, 3.0
    %vm162 = vcmp.eq.f32.partialorder %v102, 3.0
    %vm163 = vcmp.eq.f32.partialorder %v103, 3.0
    %vm164 = vcmp.eq.f32.partialorder %v104, 3.0
    %v165 = vsel %vm161, 1, 0
    %v166 = vsel %vm162, 1, 0
    %v167 = vsel %vm163, 1, 0
    %v168 = vsel %vm164, 1, 0
    %v169 = vcvt.s32.f32 %v165
    %v170 = vcvt.s32.f32 %v166
    %v171 = vcvt.s32.f32 %v167
    %v172 = vcvt.s32.f32 %v168
    %v173 = vadd.f32 %v169, %v170
    %v174 = vadd.f32 %v173, %v171
    %v175 = vadd.f32 %v174, %v172
    %s176 = scalar_lea.vmem [#allocation2], 24
    %v177 = vld [vmem:[%s176] sm:$0xff]
    %v178 = vadd.f32 %v177, %v175
    %179 = vst [vmem:[%s176] sm:$0xff] %v178
    %vm180 = vcmp.eq.f32.partialorder %v101, 4.0
    %vm181 = vcmp.eq.f32.partialorder %v102, 4.0
    %vm182 = vcmp.eq.f32.partialorder %v103, 4.0
    %vm183 = vcmp.eq.f32.partialorder %v104, 4.0
    %v184 = vsel %vm180, 1, 0
    %v185 = vsel %vm181, 1, 0
    %v186 = vsel %vm182, 1, 0
    %v187 = vsel %vm183, 1, 0
    %v188 = vcvt.s32.f32 %v184
    %v189 = vcvt.s32.f32 %v185
    %v190 = vcvt.s32.f32 %v186
    %v191 = vcvt.s32.f32 %v187
    %v192 = vadd.f32 %v188, %v189
    %v193 = vadd.f32 %v192, %v190
    %v194 = vadd.f32 %v193, %v191
    %s195 = scalar_lea.vmem [#allocation2], 32
    %v196 = vld [vmem:[%s195] sm:$0xff]
    %v197 = vadd.f32 %v196, %v194
    %198 = vst [vmem:[%s195] sm:$0xff] %v197
    %vm199 = vcmp.eq.f32.partialorder %v101, 5.0
    %vm200 = vcmp.eq.f32.partialorder %v102, 5.0
    %vm201 = vcmp.eq.f32.partialorder %v103, 5.0
    %vm202 = vcmp.eq.f32.partialorder %v104, 5.0
    %v203 = vsel %vm199, 1, 0
    %v204 = vsel %vm200, 1, 0
    %v205 = vsel %vm201, 1, 0
    %v206 = vsel %vm202, 1, 0
    %v207 = vcvt.s32.f32 %v203
    %v208 = vcvt.s32.f32 %v204
    %v209 = vcvt.s32.f32 %v205
    %v210 = vcvt.s32.f32 %v206
    %v211 = vadd.f32 %v207, %v208
    %v212 = vadd.f32 %v211, %v209
    %v213 = vadd.f32 %v212, %v210
    %s214 = scalar_lea.vmem [#allocation2], 40
    %v215 = vld [vmem:[%s214] sm:$0xff]
    %v216 = vadd.f32 %v215, %v213
    %217 = vst [vmem:[%s214] sm:$0xff] %v216
    %vm218 = vcmp.eq.f32.partialorder %v101, 6.0
    %vm219 = vcmp.eq.f32.partialorder %v102, 6.0
    %vm220 = vcmp.eq.f32.partialorder %v103, 6.0
    %vm221 = vcmp.eq.f32.partialorder %v104, 6.0
    %v222 = vsel %vm218, 1, 0
    %v223 = vsel %vm219, 1, 0
    %v224 = vsel %vm220, 1, 0
    %v225 = vsel %vm221, 1, 0
    %v226 = vcvt.s32.f32 %v222
    %v227 = vcvt.s32.f32 %v223
    %v228 = vcvt.s32.f32 %v224
    %v229 = vcvt.s32.f32 %v225
    %v230 = vadd.f32 %v226, %v227
    %v231 = vadd.f32 %v230, %v228
    %v232 = vadd.f32 %v231, %v229
    %s233 = scalar_lea.vmem [#allocation2], 48
    %v234 = vld [vmem:[%s233] sm:$0xff]
    %v235 = vadd.f32 %v234, %v232
    %236 = vst [vmem:[%s233] sm:$0xff] %v235
    %vm237 = vcmp.eq.f32.partialorder %v101, 7.0
    %vm238 = vcmp.eq.f32.partialorder %v102, 7.0
    %vm239 = vcmp.eq.f32.partialorder %v103, 7.0
    %vm240 = vcmp.eq.f32.partialorder %v104, 7.0
    %v241 = vsel %vm237, 1, 0
    %v242 = vsel %vm238, 1, 0
    %v243 = vsel %vm239, 1, 0
    %v244 = vsel %vm240, 1, 0
    %v245 = vcvt.s32.f32 %v241
    %v246 = vcvt.s32.f32 %v242
    %v247 = vcvt.s32.f32 %v243
    %v248 = vcvt.s32.f32 %v244
    %v249 = vadd.f32 %v245, %v246
    %v250 = vadd.f32 %v249, %v247
    %v251 = vadd.f32 %v250, %v248
    %s252 = scalar_lea.vmem [#allocation2], 56
    %v253 = vld [vmem:[%s252] sm:$0xff]
    %v254 = vadd.f32 %v253, %v251
    %255 = vst [vmem:[%s252] sm:$0xff] %v254
    %vm256 = vcmp.eq.f32.partialorder %v101, 8.0
    %vm257 = vcmp.eq.f32.partialorder %v102, 8.0
    %vm258 = vcmp.eq.f32.partialorder %v103, 8.0
    %vm259 = vcmp.eq.f32.partialorder %v104, 8.0
    %v260 = vsel %vm256, 1, 0
    %v261 = vsel %vm257, 1, 0
    %v262 = vsel %vm258, 1, 0
    %v263 = vsel %vm259, 1, 0
    %v264 = vcvt.s32.f32 %v260
    %v265 = vcvt.s32.f32 %v261
    %v266 = vcvt.s32.f32 %v262
    %v267 = vcvt.s32.f32 %v263
    %v268 = vadd.f32 %v264, %v265
    %v269 = vadd.f32 %v268, %v266
    %v270 = vadd.f32 %v269, %v267
    %s271 = scalar_lea.vmem [#allocation2], 64
    %v272 = vld [vmem:[%s271] sm:$0xff]
    %v273 = vadd.f32 %v272, %v270
    %274 = vst [vmem:[%s271] sm:$0xff] %v273
    %vm275 = vcmp.eq.f32.partialorder %v101, 9.0
    %vm276 = vcmp.eq.f32.partialorder %v102, 9.0
    %vm277 = vcmp.eq.f32.partialorder %v103, 9.0
    %vm278 = vcmp.eq.f32.partialorder %v104, 9.0
    %v279 = vsel %vm275, 1, 0
    %v280 = vsel %vm276, 1, 0
    %v281 = vsel %vm277, 1, 0
    %v282 = vsel %vm278, 1, 0
    %v283 = vcvt.s32.f32 %v279
    %v284 = vcvt.s32.f32 %v280
    %v285 = vcvt.s32.f32 %v281
    %v286 = vcvt.s32.f32 %v282
    %v287 = vadd.f32 %v283, %v284
    %v288 = vadd.f32 %v287, %v285
    %v289 = vadd.f32 %v288, %v286
    %s290 = scalar_lea.vmem [#allocation2], 72
    %v291 = vld [vmem:[%s290] sm:$0xff]
    %v292 = vadd.f32 %v291, %v289
    %293 = vst [vmem:[%s290] sm:$0xff] %v292
    %vm294 = vcmp.eq.f32.partialorder %v101, 10.0
    %vm295 = vcmp.eq.f32.partialorder %v102, 10.0
    %vm296 = vcmp.eq.f32.partialorder %v103, 10.0
    %vm297 = vcmp.eq.f32.partialorder %v104, 10.0
    %v298 = vsel %vm294, 1, 0
    %v299 = vsel %vm295, 1, 0
    %v300 = vsel %vm296, 1, 0
    %v301 = vsel %vm297, 1, 0
    %v302 = vcvt.s32.f32 %v298
    %v303 = vcvt.s32.f32 %v299
    %v304 = vcvt.s32.f32 %v300
    %v305 = vcvt.s32.f32 %v301
    %v306 = vadd.f32 %v302, %v303
    %v307 = vadd.f32 %v306, %v304
    %v308 = vadd.f32 %v307, %v305
    %s309 = scalar_lea.vmem [#allocation2], 80
    %v310 = vld [vmem:[%s309] sm:$0xff]
    %v311 = vadd.f32 %v310, %v308
    %312 = vst [vmem:[%s309] sm:$0xff] %v311
    %vm313 = vcmp.eq.f32.partialorder %v101, 11.0
    %vm314 = vcmp.eq.f32.partialorder %v102, 11.0
    %vm315 = vcmp.eq.f32.partialorder %v103, 11.0
    %vm316 = vcmp.eq.f32.partialorder %v104, 11.0
    %v317 = vsel %vm313, 1, 0
    %v318 = vsel %vm314, 1, 0
    %v319 = vsel %vm315, 1, 0
    %v320 = vsel %vm316, 1, 0
    %v321 = vcvt.s32.f32 %v317
    %v322 = vcvt.s32.f32 %v318
    %v323 = vcvt.s32.f32 %v319
    %v324 = vcvt.s32.f32 %v320
    %v325 = vadd.f32 %v321, %v322
    %v326 = vadd.f32 %v325, %v323
    %v327 = vadd.f32 %v326, %v324
    %s328 = scalar_lea.vmem [#allocation2], 88
    %v329 = vld [vmem:[%s328] sm:$0xff]
    %v330 = vadd.f32 %v329, %v327
    %331 = vst [vmem:[%s328] sm:$0xff] %v330
    %vm332 = vcmp.eq.f32.partialorder %v101, 12.0
    %vm333 = vcmp.eq.f32.partialorder %v102, 12.0
    %vm334 = vcmp.eq.f32.partialorder %v103, 12.0
    %vm335 = vcmp.eq.f32.partialorder %v104, 12.0
    %v336 = vsel %vm332, 1, 0
    %v337 = vsel %vm333, 1, 0
    %v338 = vsel %vm334, 1, 0
    %v339 = vsel %vm335, 1, 0
    %v340 = vcvt.s32.f32 %v336
    %v341 = vcvt.s32.f32 %v337
    %v342 = vcvt.s32.f32 %v338
    %v343 = vcvt.s32.f32 %v339
    %v344 = vadd.f32 %v340, %v341
    %v345 = vadd.f32 %v344, %v342
    %v346 = vadd.f32 %v345, %v343
    %s347 = scalar_lea.vmem [#allocation2], 96
    %v348 = vld [vmem:[%s347] sm:$0xff]
    %v349 = vadd.f32 %v348, %v346
    %350 = vst [vmem:[%s347] sm:$0xff] %v349
    %vm351 = vcmp.eq.f32.partialorder %v101, 13.0
    %vm352 = vcmp.eq.f32.partialorder %v102, 13.0
    %vm353 = vcmp.eq.f32.partialorder %v103, 13.0
    %vm354 = vcmp.eq.f32.partialorder %v104, 13.0
    %v355 = vsel %vm351, 1, 0
    %v356 = vsel %vm352, 1, 0
    %v357 = vsel %vm353, 1, 0
    %v358 = vsel %vm354, 1, 0
    %v359 = vcvt.s32.f32 %v355
    %v360 = vcvt.s32.f32 %v356
    %v361 = vcvt.s32.f32 %v357
    %v362 = vcvt.s32.f32 %v358
    %v363 = vadd.f32 %v359, %v360
    %v364 = vadd.f32 %v363, %v361
    %v365 = vadd.f32 %v364, %v362
    %s366 = scalar_lea.vmem [#allocation2], 104
    %v367 = vld [vmem:[%s366] sm:$0xff]
    %v368 = vadd.f32 %v367, %v365
    %369 = vst [vmem:[%s366] sm:$0xff] %v368
    %vm370 = vcmp.eq.f32.partialorder %v101, 14.0
    %vm371 = vcmp.eq.f32.partialorder %v102, 14.0
    %vm372 = vcmp.eq.f32.partialorder %v103, 14.0
    %vm373 = vcmp.eq.f32.partialorder %v104, 14.0
    %v374 = vsel %vm370, 1, 0
    %v375 = vsel %vm371, 1, 0
    %v376 = vsel %vm372, 1, 0
    %v377 = vsel %vm373, 1, 0
    %v378 = vcvt.s32.f32 %v374
    %v379 = vcvt.s32.f32 %v375
    %v380 = vcvt.s32.f32 %v376
    %v381 = vcvt.s32.f32 %v377
    %v382 = vadd.f32 %v378, %v379
    %v383 = vadd.f32 %v382, %v380
    %v384 = vadd.f32 %v383, %v381
    %s385 = scalar_lea.vmem [#allocation2], 112
    %v386 = vld [vmem:[%s385] sm:$0xff]
    %v387 = vadd.f32 %v386, %v384
    %388 = vst [vmem:[%s385] sm:$0xff] %v387
    %vm389 = vcmp.eq.f32.partialorder %v101, 15.0
    %vm390 = vcmp.eq.f32.partialorder %v102, 15.0
    %vm391 = vcmp.eq.f32.partialorder %v103, 15.0
    %vm392 = vcmp.eq.f32.partialorder %v104, 15.0
    %v393 = vsel %vm389, 1, 0
    %v394 = vsel %vm390, 1, 0
    %v395 = vsel %vm391, 1, 0
    %v396 = vsel %vm392, 1, 0
    %v397 = vcvt.s32.f32 %v393
    %v398 = vcvt.s32.f32 %v394
    %v399 = vcvt.s32.f32 %v395
    %v400 = vcvt.s32.f32 %v396
    %v401 = vadd.f32 %v397, %v398
    %v402 = vadd.f32 %v401, %v399
    %v403 = vadd.f32 %v402, %v400
    %s404 = scalar_lea.vmem [#allocation2], 120
    %v405 = vld [vmem:[%s404] sm:$0xff]
    %v406 = vadd.f32 %v405, %v403
    %407 = vst [vmem:[%s404] sm:$0xff] %v406
    // Predicated region
    $region14: #{tpu_custom_call.1} parent=1 // pred_check
      %p408 = pneg %p32
    $region15: #{tpu_custom_call.1} parent=1 // pred_check_branch
      %410 = sbr.rel (%p408) target = $region17
    $region16: #{tpu_custom_call.1} parent=1 // pred_region
      %v411 = vld [vmem:[#allocation2] sm:$0xff]
      %v412 = vld [vmem:[#allocation2 + $0x8] sm:$0xff]
      %v413 = vld [vmem:[#allocation2 + $0x10] sm:$0xff]
      %v414 = vld [vmem:[#allocation2 + $0x18] sm:$0xff]
      %v415 = vld [vmem:[#allocation2 + $0x20] sm:$0xff]
      %v416 = vld [vmem:[#allocation2 + $0x28] sm:$0xff]
      %v417 = vld [vmem:[#allocation2 + $0x30] sm:$0xff]
      %v418 = vld [vmem:[#allocation2 + $0x38] sm:$0xff]
      %v419 = vld [vmem:[#allocation2 + $0x40] sm:$0xff]
      %v420 = vld [vmem:[#allocation2 + $0x48] sm:$0xff]
      %v421 = vld [vmem:[#allocation2 + $0x50] sm:$0xff]
      %v422 = vld [vmem:[#allocation2 + $0x58] sm:$0xff]
      %v423 = vld [vmem:[#allocation2 + $0x60] sm:$0xff]
      %v424 = vld [vmem:[#allocation2 + $0x68] sm:$0xff]
      %v425 = vld [vmem:[#allocation2 + $0x70] sm:$0xff]
      %v426 = vld [vmem:[#allocation2 + $0x78] sm:$0xff]
      %427 = vadd.xlane.f32.xlu0 %v411
      %v428 = vpop.xlane.xlu0 %427
      %429 = vadd.xlane.f32.xlu0 %v412
      %v430 = vpop.xlane.xlu0 %429
      %431 = vadd.xlane.f32.xlu0 %v413
      %v432 = vpop.xlane.xlu0 %431
      %433 = vadd.xlane.f32.xlu0 %v414
      %v434 = vpop.xlane.xlu0 %433
      %435 = vadd.xlane.f32.xlu0 %v415
      %v436 = vpop.xlane.xlu0 %435
      %437 = vadd.xlane.f32.xlu0 %v416
      %v438 = vpop.xlane.xlu0 %437
      %439 = vadd.xlane.f32.xlu0 %v417
      %v440 = vpop.xlane.xlu0 %439
      %441 = vadd.xlane.f32.xlu0 %v418
      %v442 = vpop.xlane.xlu0 %441
      %443 = vadd.xlane.f32.xlu0 %v419
      %v444 = vpop.xlane.xlu0 %443
      %445 = vadd.xlane.f32.xlu0 %v420
      %v446 = vpop.xlane.xlu0 %445
      %447 = vadd.xlane.f32.xlu0 %v421
      %v448 = vpop.xlane.xlu0 %447
      %449 = vadd.xlane.f32.xlu0 %v422
      %v450 = vpop.xlane.xlu0 %449
      %451 = vadd.xlane.f32.xlu0 %v423
      %v452 = vpop.xlane.xlu0 %451
      %453 = vadd.xlane.f32.xlu0 %v424
      %v454 = vpop.xlane.xlu0 %453
      %455 = vadd.xlane.f32.xlu0 %v425
      %v456 = vpop.xlane.xlu0 %455
      %457 = vadd.xlane.f32.xlu0 %v426
      %v458 = vpop.xlane.xlu0 %457
      %v475 = vlaneseq
      %v476 = vshrl.u32 %v475, 7
      %v477 = vsub.s32 %v55, %v476
      %v478 = vrot.slane %v428, %v477
      %v479 = vlaneseq
      %v480 = vshrl.u32 %v479, 7
      %v481 = vsub.s32 %v55, %v480
      %v482 = vrot.slane %v430, %v481
      %v483 = vlaneseq
      %v484 = vshrl.u32 %v483, 7
      %v485 = vsub.s32 %v55, %v484
      %v486 = vrot.slane %v432, %v485
      %v487 = vlaneseq
      %v488 = vshrl.u32 %v487, 7
      %v489 = vsub.s32 %v55, %v488
      %v490 = vrot.slane %v434, %v489
      %v491 = vlaneseq
      %v492 = vshrl.u32 %v491, 7
      %v493 = vsub.s32 %v55, %v492
      %v494 = vrot.slane %v436, %v493
      %v495 = vlaneseq
      %v496 = vshrl.u32 %v495, 7
      %v497 = vsub.s32 %v55, %v496
      %v498 = vrot.slane %v438, %v497
      %v499 = vlaneseq
      %v500 = vshrl.u32 %v499, 7
      %v501 = vsub.s32 %v55, %v500
      %v502 = vrot.slane %v440, %v501
      %v503 = vlaneseq
      %v504 = vshrl.u32 %v503, 7
      %v505 = vsub.s32 %v55, %v504
      %v506 = vrot.slane %v442, %v505
      %v507 = vlaneseq
      %v508 = vshrl.u32 %v507, 7
      %v509 = vsub.s32 %v55, %v508
      %v510 = vrot.slane %v444, %v509
      %v511 = vlaneseq
      %v512 = vshrl.u32 %v511, 7
      %v513 = vsub.s32 %v55, %v512
      %v514 = vrot.slane %v446, %v513
      %v515 = vlaneseq
      %v516 = vshrl.u32 %v515, 7
      %v517 = vsub.s32 %v55, %v516
      %v518 = vrot.slane %v448, %v517
      %v519 = vlaneseq
      %v520 = vshrl.u32 %v519, 7
      %v521 = vsub.s32 %v55, %v520
      %v522 = vrot.slane %v450, %v521
      %v523 = vlaneseq
      %v524 = vshrl.u32 %v523, 7
      %v525 = vsub.s32 %v55, %v524
      %v526 = vrot.slane %v452, %v525
      %v527 = vlaneseq
      %v528 = vshrl.u32 %v527, 7
      %v529 = vsub.s32 %v55, %v528
      %v530 = vrot.slane %v454, %v529
      %v531 = vlaneseq
      %v532 = vshrl.u32 %v531, 7
      %v533 = vsub.s32 %v55, %v532
      %v534 = vrot.slane %v456, %v533
      %v535 = vlaneseq
      %v536 = vshrl.u32 %v535, 7
      %v537 = vsub.s32 %v55, %v536
      %v538 = vrot.slane %v458, %v537
      %vm539 = vcmask 1041409
      %v540 = vsel %vm539, %v482, %v478
      %vm541 = vcmask 1042434
      %v542 = vsel %vm541, %v486, %v540
      %vm543 = vcmask 1043459
      %v544 = vsel %vm543, %v490, %v542
      %vm545 = vcmask 1044484
      %v546 = vsel %vm545, %v494, %v544
      %vm547 = vcmask 1045509
      %v548 = vsel %vm547, %v498, %v546
      %vm549 = vcmask 1046534
      %v550 = vsel %vm549, %v502, %v548
      %vm551 = vcmask 1047559
      %v552 = vsel %vm551, %v506, %v550
      %v553 = vsel %vm539, %v514, %v510
      %v554 = vsel %vm541, %v518, %v553
      %v555 = vsel %vm543, %v522, %v554
      %v556 = vsel %vm545, %v526, %v555
      %v557 = vsel %vm547, %v530, %v556
      %v558 = vsel %vm549, %v534, %v557
      %v559 = vsel %vm551, %v538, %v558
      %vm562 = vcmask 64512
      %563 = vst.msk [vmem:[%s1] sm:$0xff] %vm562, %v552
      %564 = vst.msk [vmem:[%s1 + $0x8] sm:$0xff] %vm562, %v559
    $region17: #{tpu_custom_call.1} parent=1 // pred_fallthru
      _
    // Predicated region
    $region18: #{tpu_custom_call.1} parent=1 // pred_check
      _
    $region19: #{tpu_custom_call.1} parent=1 // pred_check_branch
      %566 = sbr.rel (0) target = $region21
    $region20: #{tpu_custom_call.1} parent=1 // pred_region
      _
    $region21: #{tpu_custom_call.1} parent=1 // pred_fallthru
      _
    // Predicated region
    $region22: #{tpu_custom_call.1} parent=1 // pred_check
      _
    $region23: #{tpu_custom_call.1} parent=1 // pred_check_branch
      %568 = sbr.rel (0) target = $region25
    $region24: #{tpu_custom_call.1} parent=1 // pred_region
      _
    $region25: #{tpu_custom_call.1} parent=1 // pred_fallthru
      _
    %569 = vsyncpa [#allocation4], 1

</llo_original>
